<compile_context>
chip_gen: v7x
topology: tpu7x:2x2x1
jax: 0.10.0
libtpu: 0.0.40
codegen_flags: <defaults>
</compile_context>

<pallas_src>
import functools
import math

import jax
import jax.numpy as jnp
from jax.experimental import pallas as pl
from jax.experimental.pallas import tpu as pltpu


_LANE = 1024          # lane-dense last dim (multiple of 128)
_MAX_TILE_ROWS = 512  # sublane tile (multiple of 8); (512,1024) f32 = 2 MiB

# 32-bit mixing constants, expressed as signed int32 Python ints so all kernel
# arithmetic stays in plain (wrapping) int32 — maximally portable on Mosaic.
_M1 = 0x7FEB352D
_M2 = 0x846CA68B - (1 << 32)
_GOLD = 0x9E3779B9 - (1 << 32)
_S1 = 0x85EBCA6B - (1 << 32)
_S2 = 0xC2B2AE35 - (1 << 32)


def _round_up(x, m):
    return (x + m - 1) // m * m


def _mix32(x):
    # lowbias32 finalizer in two's-complement int32; masked arithmetic shifts
    # are bit-identical to the logical shifts of the uint32 reference.
    x = x ^ ((x >> 16) & 0xFFFF)
    x = x * _M1
    x = x ^ ((x >> 15) & 0x1FFFF)
    x = x * _M2
    x = x ^ ((x >> 16) & 0xFFFF)
    return x


def _gaussian_noise_kernel(seed_ref, x_ref, o_ref, *, std):
    rows, lane = x_ref.shape
    pid = pl.program_id(0)

    # Unique per-element counter = global flat index of each element.
    r = jax.lax.broadcasted_iota(jnp.int32, (rows, lane), 0)
    c = jax.lax.broadcasted_iota(jnp.int32, (rows, lane), 1)
    ctr = (pid * rows + r) * lane + c

    # Mix in the seed (golden-ratio increment), derive two decorrelated
    # 24-bit uniform streams, then Box-Muller -> exact standard normal.
    base = ctr + seed_ref[0] * _GOLD
    h1 = _mix32(base ^ _S1)
    h2 = _mix32(base ^ _S2)
    inv24 = jnp.float32(1.0 / (1 << 24))
    u1 = ((h1 & 0x00FFFFFF).astype(jnp.float32) + 0.5) * inv24   # (0, 1)
    u2 = ((h2 & 0x00FFFFFF).astype(jnp.float32) + 0.5) * inv24   # (0, 1)

    rad = jnp.sqrt(-2.0 * jnp.log(u1))
    noise = rad * jnp.cos(jnp.float32(2.0 * math.pi) * u2)

    o_ref[...] = (x_ref[...].astype(jnp.float32)
                  + jnp.float32(std) * noise).astype(o_ref.dtype)


def gaussian_noise(x, seed, std=0.15):
    """Returns x + N(0, std) noise, same shape/dtype as x (any shape)."""
    orig_shape = x.shape
    total = x.size

    # Lane-dense flattening independent of H*W; pad so blocks divide evenly.
    lane = _LANE
    rows = _round_up(pl.cdiv(total, lane), 8)
    tile_rows = min(_MAX_TILE_ROWS, rows)
    rows = _round_up(rows, tile_rows)
    padded_total = rows * lane

    flat = x.reshape(-1)
    if padded_total != total:
        flat = jnp.pad(flat, (0, padded_total - total))
    x2 = flat.reshape(rows, lane)

    seed_arr = jnp.asarray([seed], dtype=jnp.int32)
    kernel = functools.partial(_gaussian_noise_kernel, std=float(std))

    out2 = pl.pallas_call(
        kernel,
        out_shape=jax.ShapeDtypeStruct(x2.shape, x.dtype),
        grid_spec=pltpu.PrefetchScalarGridSpec(
            num_scalar_prefetch=1,                      # seed lands in SMEM
            grid=(rows // tile_rows,),
            in_specs=[pl.BlockSpec((tile_rows, lane), lambda i, seed: (i, 0))],
            out_specs=pl.BlockSpec((tile_rows, lane), lambda i, seed: (i, 0)),
        ),
        compiler_params=pltpu.CompilerParams(
            dimension_semantics=("parallel",),          # shard tiles on v7x's 2 TCs
        ),
        input_output_aliases={1: 0},                    # x2 (input after seed) -> output
    )(seed_arr, x2)

    return out2.reshape(-1)[:total].reshape(orig_shape)


if __name__ == "__main__":
    key = jax.random.PRNGKey(0)
    # Small NCHW input consistent with the module's (batch, C, H, W) convention.
    x = jax.random.normal(key, (2, 4, 16, 16), dtype=jnp.float32)

    out = gaussian_noise(x, seed=1234, std=0.15)
    out = jax.block_until_ready(out)

    # Sanity: shape/dtype preserved, noise finite with std ~= 0.15, no repeats.
    assert out.shape == x.shape and out.dtype == x.dtype
    diff = out - x
    assert bool(jnp.all(jnp.isfinite(diff)))
    s = float(jnp.std(diff))
    assert 0.08 < s < 0.25, s

    print("KERNEL_OK")
</pallas_src>

<mosaic_0001>
module attributes {stable_mosaic.version = 11 : i64} {
  func.func @_gaussian_noise_kernel(%arg0: i32, %arg1: memref<1xi32, #tpu.memory_space<smem>>, %arg2: memref<8x1024xf32, #tpu.memory_space<vmem>>, %arg3: memref<8x1024xf32, #tpu.memory_space<vmem>>) attributes {dimension_semantics = [#tpu.dimension_semantics<parallel>], iteration_bounds = array<i64: 1>, scalar_prefetch = 1 : i64, scratch_operands = 0 : i64, tpu.core_type = #tpu.core_type<tc>, window_params = [{transform_indices = @transform_0, window_bounds = array<i64: 8, 1024>}, {transform_indices = @transform_1, window_bounds = array<i64: 8, 1024>}]} {
    %0 = tpu.iota {dimensions = array<i32: 0>} : vector<8x1024xi32>
    %1 = tpu.iota {dimensions = array<i32: 1>} : vector<8x1024xi32>
    %c8_i32 = arith.constant 8 : i32
    %2 = arith.muli %arg0, %c8_i32 : i32
    %3 = vector.broadcast %2 : i32 to vector<8x1024xi32>
    %4 = arith.addi %3, %0 : vector<8x1024xi32>
    %c1024_i32 = arith.constant 1024 : i32
    %5 = vector.broadcast %c1024_i32 : i32 to vector<8x1024xi32>
    %6 = arith.muli %4, %5 : vector<8x1024xi32>
    %7 = arith.addi %6, %1 : vector<8x1024xi32>
    %c0 = arith.constant 0 : index
    %8 = memref.load %arg1[%c0] : memref<1xi32, #tpu.memory_space<smem>>
    %c-1640531527_i32 = arith.constant -1640531527 : i32
    %9 = arith.muli %8, %c-1640531527_i32 : i32
    %10 = vector.broadcast %9 : i32 to vector<8x1024xi32>
    %11 = arith.addi %7, %10 : vector<8x1024xi32>
    %c-2048144789_i32 = arith.constant -2048144789 : i32
    %12 = vector.broadcast %c-2048144789_i32 : i32 to vector<8x1024xi32>
    %13 = arith.xori %11, %12 : vector<8x1024xi32>
    %c16_i32 = arith.constant 16 : i32
    %14 = vector.broadcast %c16_i32 : i32 to vector<8x1024xi32>
    %15 = arith.shrsi %13, %14 : vector<8x1024xi32>
    %c65535_i32 = arith.constant 65535 : i32
    %16 = vector.broadcast %c65535_i32 : i32 to vector<8x1024xi32>
    %17 = arith.andi %15, %16 : vector<8x1024xi32>
    %18 = arith.xori %13, %17 : vector<8x1024xi32>
    %c2146121005_i32 = arith.constant 2146121005 : i32
    %19 = vector.broadcast %c2146121005_i32 : i32 to vector<8x1024xi32>
    %20 = arith.muli %18, %19 : vector<8x1024xi32>
    %c15_i32 = arith.constant 15 : i32
    %21 = vector.broadcast %c15_i32 : i32 to vector<8x1024xi32>
    %22 = arith.shrsi %20, %21 : vector<8x1024xi32>
    %c131071_i32 = arith.constant 131071 : i32
    %23 = vector.broadcast %c131071_i32 : i32 to vector<8x1024xi32>
    %24 = arith.andi %22, %23 : vector<8x1024xi32>
    %25 = arith.xori %20, %24 : vector<8x1024xi32>
    %c-2073254261_i32 = arith.constant -2073254261 : i32
    %26 = vector.broadcast %c-2073254261_i32 : i32 to vector<8x1024xi32>
    %27 = arith.muli %25, %26 : vector<8x1024xi32>
    %c16_i32_0 = arith.constant 16 : i32
    %28 = vector.broadcast %c16_i32_0 : i32 to vector<8x1024xi32>
    %29 = arith.shrsi %27, %28 : vector<8x1024xi32>
    %c65535_i32_1 = arith.constant 65535 : i32
    %30 = vector.broadcast %c65535_i32_1 : i32 to vector<8x1024xi32>
    %31 = arith.andi %29, %30 : vector<8x1024xi32>
    %32 = arith.xori %27, %31 : vector<8x1024xi32>
    %c-1028477387_i32 = arith.constant -1028477387 : i32
    %33 = vector.broadcast %c-1028477387_i32 : i32 to vector<8x1024xi32>
    %34 = arith.xori %11, %33 : vector<8x1024xi32>
    %c16_i32_2 = arith.constant 16 : i32
    %35 = vector.broadcast %c16_i32_2 : i32 to vector<8x1024xi32>
    %36 = arith.shrsi %34, %35 : vector<8x1024xi32>
    %c65535_i32_3 = arith.constant 65535 : i32
    %37 = vector.broadcast %c65535_i32_3 : i32 to vector<8x1024xi32>
    %38 = arith.andi %36, %37 : vector<8x1024xi32>
    %39 = arith.xori %34, %38 : vector<8x1024xi32>
    %c2146121005_i32_4 = arith.constant 2146121005 : i32
    %40 = vector.broadcast %c2146121005_i32_4 : i32 to vector<8x1024xi32>
    %41 = arith.muli %39, %40 : vector<8x1024xi32>
    %c15_i32_5 = arith.constant 15 : i32
    %42 = vector.broadcast %c15_i32_5 : i32 to vector<8x1024xi32>
    %43 = arith.shrsi %41, %42 : vector<8x1024xi32>
    %c131071_i32_6 = arith.constant 131071 : i32
    %44 = vector.broadcast %c131071_i32_6 : i32 to vector<8x1024xi32>
    %45 = arith.andi %43, %44 : vector<8x1024xi32>
    %46 = arith.xori %41, %45 : vector<8x1024xi32>
    %c-2073254261_i32_7 = arith.constant -2073254261 : i32
    %47 = vector.broadcast %c-2073254261_i32_7 : i32 to vector<8x1024xi32>
    %48 = arith.muli %46, %47 : vector<8x1024xi32>
    %c16_i32_8 = arith.constant 16 : i32
    %49 = vector.broadcast %c16_i32_8 : i32 to vector<8x1024xi32>
    %50 = arith.shrsi %48, %49 : vector<8x1024xi32>
    %c65535_i32_9 = arith.constant 65535 : i32
    %51 = vector.broadcast %c65535_i32_9 : i32 to vector<8x1024xi32>
    %52 = arith.andi %50, %51 : vector<8x1024xi32>
    %53 = arith.xori %48, %52 : vector<8x1024xi32>
    %c16777215_i32 = arith.constant 16777215 : i32
    %54 = vector.broadcast %c16777215_i32 : i32 to vector<8x1024xi32>
    %55 = arith.andi %32, %54 : vector<8x1024xi32>
    %56 = arith.sitofp %55 : vector<8x1024xi32> to vector<8x1024xf32>
    %cst = arith.constant 5.000000e-01 : f32
    %57 = vector.broadcast %cst : f32 to vector<8x1024xf32>
    %58 = arith.addf %56, %57 : vector<8x1024xf32>
    %cst_10 = arith.constant 5.96046448E-8 : f32
    %59 = vector.broadcast %cst_10 : f32 to vector<8x1024xf32>
    %60 = arith.mulf %58, %59 : vector<8x1024xf32>
    %c16777215_i32_11 = arith.constant 16777215 : i32
    %61 = vector.broadcast %c16777215_i32_11 : i32 to vector<8x1024xi32>
    %62 = arith.andi %53, %61 : vector<8x1024xi32>
    %63 = arith.sitofp %62 : vector<8x1024xi32> to vector<8x1024xf32>
    %cst_12 = arith.constant 5.000000e-01 : f32
    %64 = vector.broadcast %cst_12 : f32 to vector<8x1024xf32>
    %65 = arith.addf %63, %64 : vector<8x1024xf32>
    %cst_13 = arith.constant 5.96046448E-8 : f32
    %66 = vector.broadcast %cst_13 : f32 to vector<8x1024xf32>
    %67 = arith.mulf %65, %66 : vector<8x1024xf32>
    %68 = math.log %60 : vector<8x1024xf32>
    %cst_14 = arith.constant -2.000000e+00 : f32
    %69 = vector.broadcast %cst_14 : f32 to vector<8x1024xf32>
    %70 = arith.mulf %69, %68 : vector<8x1024xf32>
    %71 = math.sqrt %70 : vector<8x1024xf32>
    %cst_15 = arith.constant 6.28318548 : f32
    %72 = vector.broadcast %cst_15 : f32 to vector<8x1024xf32>
    %73 = arith.mulf %72, %67 : vector<8x1024xf32>
    %74 = math.cos %73 : vector<8x1024xf32>
    %75 = arith.mulf %71, %74 : vector<8x1024xf32>
    %c0_16 = arith.constant 0 : index
    %c0_17 = arith.constant 0 : index
    %76 = vector.load %arg2[%c0_16, %c0_17] : memref<8x1024xf32, #tpu.memory_space<vmem>>, vector<8x1024xf32>
    %cst_18 = arith.constant 1.500000e-01 : f32
    %77 = vector.broadcast %cst_18 : f32 to vector<8x1024xf32>
    %78 = arith.mulf %77, %75 : vector<8x1024xf32>
    %79 = arith.addf %76, %78 : vector<8x1024xf32>
    %c0_19 = arith.constant 0 : index
    %c0_20 = arith.constant 0 : index
    %80 = vector.load %arg3[%c0_19, %c0_20] : memref<8x1024xf32, #tpu.memory_space<vmem>>, vector<8x1024xf32>
    tpu.vector_store %arg3[%c0_19, %c0_20], %79 {strides = array<i32>} : memref<8x1024xf32, #tpu.memory_space<vmem>>, vector<8x1024xf32>,
    return
  }
  func.func @transform_0(%arg0: i32, %arg1: memref<1xi32, #tpu.memory_space<smem>>) -> (i32, i32) {
    %c0_i32 = arith.constant 0 : i32
    %c0_i32_0 = arith.constant 0 : i32
    return %arg0, %c0_i32 : i32, i32
  }
  func.func @transform_1(%arg0: i32, %arg1: memref<1xi32, #tpu.memory_space<smem>>) -> (i32, i32) {
    %c0_i32 = arith.constant 0 : i32
    %c0_i32_0 = arith.constant 0 : i32
    return %arg0, %c0_i32 : i32, i32
  }
}

</mosaic_0001>

<llo_original>
// kernel: tpu_custom_call.1
$region0: #{tpu_custom_call.1}
  #allocation0 [shape = 'u32[]', space=smem, size = 0x4, offset = 0x4, fixed_abs, tag = 'smem constant byte address 0x4 - core index']
  #allocation1 [shape = 'u32[144,128]{1,0:T(1,128)}', space=vmem, size = 0x12000, scoped, tag = 'internal scratch']
  #allocation2 [shape = 's32[1]{0}', space=sflag, size = 0x4, scoped, tag = 'scoped memory for tpu_custom_call.1']
  #allocation3 [shape = 's32[1]{0:T(128)S(6)}', space=smem, size = 0x200, scoped, tag = 'prefetched SMEM operand 0']
  %s0 = inlined_call_operand.<no memory space> [shape: s32[1], index: 0, kind: input, shape index: {}]
  %s1 = inlined_call_operand.hbm [shape: f32[8,1024], index: 1, kind: input, shape index: {}, may-alias: {1,2}]
  %s2 = inlined_call_operand.hbm [shape: f32[8,1024], index: 2, kind: output, shape index: {}, may-alias: {1,2}]
  %s3 = sld [smem:[#allocation0]]
  $region18: #{tpu_custom_call.1} parent=0
    _
  %s5 = ssub.s32 1, %s3
  %s6 = scalar_select 0, %s5, %s3
  %7 = sst [smem:[#allocation3]] %s0
  $region1: #{tpu_custom_call.1} parent=0
    #allocation4 [shape = 'u8[32768]{0}', space=vmem, size = 0x8000, scoped, tag = 'input window, operand 1, single buffered']
    #allocation5 [shape = 's32[1]{0}', space=sflag, size = 0x4, scoped, tag = 'scoped memory for tpu_custom_call.1']
    #allocation6 [shape = 's32[1]{0}', space=sflag, size = 0x4, scoped, tag = 'scoped memory for tpu_custom_call.1']
    #allocation7 [shape = 'u8[32768]{0}', space=vmem, size = 0x8000, scoped, tag = 'output window, operand 0, single buffered']
    %8 = vsyncpa [#allocation5], 0
    %9 = vsyncpa [#allocation6], 0
    // Predicated region
    $region2: #{tpu_custom_call.1} parent=1 // pred_check
      _
    $region3: #{tpu_custom_call.1} parent=1 // pred_check_branch
      %11 = sbr.rel (0) target = $region5
    $region4: #{tpu_custom_call.1} parent=1 // pred_region
      %s13 = ssub.s32 1024, 1024
      %14 = vsyncadd [#allocation5], %s13
      %s16 = sshll.u32 [#allocation4], 4
      %s17 = int_to_ptr.vmem [resolvable:$true] %s16
      %19 = dma.hbm_to_vmem [thread:$0]  %s1, 1024, %s17, [#allocation5]
    $region5: #{tpu_custom_call.1} parent=1 // pred_fallthru
      _
    // Predicated region
    $region6: #{tpu_custom_call.1} parent=1 // pred_check
      _
    $region7: #{tpu_custom_call.1} parent=1 // pred_check_branch
      %21 = sbr.rel (0) target = $region9
    $region8: #{tpu_custom_call.1} parent=1 // pred_region
      %22 = dma.done [#allocation5], 1024
    $region9: #{tpu_custom_call.1} parent=1 // pred_fallthru
      _
    %v23 = vlaneseq
    %v24 = vshrl.u32 %v23, 7
    %v25 = vlaneseq
    %v26 = vand.u32 %v25, 127
    %v27 = vadd.s32 %v26, 128
    %v28 = vadd.s32 %v26, 256
    %v29 = vadd.s32 %v26, 384
    %v30 = vadd.s32 %v26, 512
    %v31 = vadd.s32 %v26, 640
    %v32 = vadd.s32 %v26, 768
    %v33 = vadd.s32 %v26, 896
    %s34 = smul.u32 0, 8
    %v35 = vstv %s34
    %v36 = vadd.s32 %v35, %v24
    %v37 = vmul.u32 %v36, 1024
    %v38 = vadd.s32 %v37, %v26
    %v39 = vadd.s32 %v37, %v27
    %v40 = vadd.s32 %v37, %v28
    %v41 = vadd.s32 %v37, %v29
    %v42 = vadd.s32 %v37, %v30
    %v43 = vadd.s32 %v37, %v31
    %v44 = vadd.s32 %v37, %v32
    %v45 = vadd.s32 %v37, %v33
    %s46 = sld [smem:[#allocation3]]
    %s47 = smul.u32 %s46, 2654435769
    %v48 = vstv %s47
    %v49 = vadd.s32 %v38, %v48
    %v50 = vadd.s32 %v39, %v48
    %v51 = vadd.s32 %v40, %v48
    %v52 = vadd.s32 %v41, %v48
    %v53 = vadd.s32 %v42, %v48
    %v54 = vadd.s32 %v43, %v48
    %v55 = vadd.s32 %v44, %v48
    %v56 = vadd.s32 %v45, %v48
    %v57 = vxor.u32 %v49, 2246822507
    %v58 = vxor.u32 %v50, 2246822507
    %v59 = vxor.u32 %v51, 2246822507
    %v60 = vxor.u32 %v52, 2246822507
    %v61 = vxor.u32 %v53, 2246822507
    %v62 = vxor.u32 %v54, 2246822507
    %v63 = vxor.u32 %v55, 2246822507
    %v64 = vxor.u32 %v56, 2246822507
    %v65 = vshra.s32 %v57, 16
    %v66 = vshra.s32 %v58, 16
    %v67 = vshra.s32 %v59, 16
    %v68 = vshra.s32 %v60, 16
    %v69 = vshra.s32 %v61, 16
    %v70 = vshra.s32 %v62, 16
    %v71 = vshra.s32 %v63, 16
    %v72 = vshra.s32 %v64, 16
    %v73 = vand.u32 %v65, 65535
    %v74 = vand.u32 %v66, 65535
    %v75 = vand.u32 %v67, 65535
    %v76 = vand.u32 %v68, 65535
    %v77 = vand.u32 %v69, 65535
    %v78 = vand.u32 %v70, 65535
    %v79 = vand.u32 %v71, 65535
    %v80 = vand.u32 %v72, 65535
    %v81 = vxor.u32 %v57, %v73
    %v82 = vxor.u32 %v58, %v74
    %v83 = vxor.u32 %v59, %v75
    %v84 = vxor.u32 %v60, %v76
    %v85 = vxor.u32 %v61, %v77
    %v86 = vxor.u32 %v62, %v78
    %v87 = vxor.u32 %v63, %v79
    %v88 = vxor.u32 %v64, %v80
    %v89 = vmul.u32 %v81, 2146121005
    %v90 = vmul.u32 %v82, 2146121005
    %v91 = vmul.u32 %v83, 2146121005
    %v92 = vmul.u32 %v84, 2146121005
    %v93 = vmul.u32 %v85, 2146121005
    %v94 = vmul.u32 %v86, 2146121005
    %v95 = vmul.u32 %v87, 2146121005
    %v96 = vmul.u32 %v88, 2146121005
    %v97 = vshra.s32 %v89, 15
    %v98 = vshra.s32 %v90, 15
    %v99 = vshra.s32 %v91, 15
    %v100 = vshra.s32 %v92, 15
    %v101 = vshra.s32 %v93, 15
    %v102 = vshra.s32 %v94, 15
    %v103 = vshra.s32 %v95, 15
    %v104 = vshra.s32 %v96, 15
    %v105 = vand.u32 %v97, 131071
    %v106 = vand.u32 %v98, 131071
    %v107 = vand.u32 %v99, 131071
    %v108 = vand.u32 %v100, 131071
    %v109 = vand.u32 %v101, 131071
    %v110 = vand.u32 %v102, 131071
    %v111 = vand.u32 %v103, 131071
    %v112 = vand.u32 %v104, 131071
    %v113 = vxor.u32 %v89, %v105
    %v114 = vxor.u32 %v90, %v106
    %v115 = vxor.u32 %v91, %v107
    %v116 = vxor.u32 %v92, %v108
    %v117 = vxor.u32 %v93, %v109
    %v118 = vxor.u32 %v94, %v110
    %v119 = vxor.u32 %v95, %v111
    %v120 = vxor.u32 %v96, %v112
    %v121 = vmul.u32 %v113, 2221713035
    %v122 = vmul.u32 %v114, 2221713035
    %v123 = vmul.u32 %v115, 2221713035
    %v124 = vmul.u32 %v116, 2221713035
    %v125 = vmul.u32 %v117, 2221713035
    %v126 = vmul.u32 %v118, 2221713035
    %v127 = vmul.u32 %v119, 2221713035
    %v128 = vmul.u32 %v120, 2221713035
    %v129 = vshra.s32 %v121, 16
    %v130 = vshra.s32 %v122, 16
    %v131 = vshra.s32 %v123, 16
    %v132 = vshra.s32 %v124, 16
    %v133 = vshra.s32 %v125, 16
    %v134 = vshra.s32 %v126, 16
    %v135 = vshra.s32 %v127, 16
    %v136 = vshra.s32 %v128, 16
    %v137 = vand.u32 %v129, 65535
    %v138 = vand.u32 %v130, 65535
    %v139 = vand.u32 %v131, 65535
    %v140 = vand.u32 %v132, 65535
    %v141 = vand.u32 %v133, 65535
    %v142 = vand.u32 %v134, 65535
    %v143 = vand.u32 %v135, 65535
    %v144 = vand.u32 %v136, 65535
    %v145 = vxor.u32 %v121, %v137
    %v146 = vxor.u32 %v122, %v138
    %v147 = vxor.u32 %v123, %v139
    %v148 = vxor.u32 %v124, %v140
    %v149 = vxor.u32 %v125, %v141
    %v150 = vxor.u32 %v126, %v142
    %v151 = vxor.u32 %v127, %v143
    %v152 = vxor.u32 %v128, %v144
    %v153 = vxor.u32 %v49, 3266489909
    %v154 = vxor.u32 %v50, 3266489909
    %v155 = vxor.u32 %v51, 3266489909
    %v156 = vxor.u32 %v52, 3266489909
    %v157 = vxor.u32 %v53, 3266489909
    %v158 = vxor.u32 %v54, 3266489909
    %v159 = vxor.u32 %v55, 3266489909
    %v160 = vxor.u32 %v56, 3266489909
    %v161 = vshra.s32 %v153, 16
    %v162 = vshra.s32 %v154, 16
    %v163 = vshra.s32 %v155, 16
    %v164 = vshra.s32 %v156, 16
    %v165 = vshra.s32 %v157, 16
    %v166 = vshra.s32 %v158, 16
    %v167 = vshra.s32 %v159, 16
    %v168 = vshra.s32 %v160, 16
    %v169 = vand.u32 %v161, 65535
    %v170 = vand.u32 %v162, 65535
    %v171 = vand.u32 %v163, 65535
    %v172 = vand.u32 %v164, 65535
    %v173 = vand.u32 %v165, 65535
    %v174 = vand.u32 %v166, 65535
    %v175 = vand.u32 %v167, 65535
    %v176 = vand.u32 %v168, 65535
    %v177 = vxor.u32 %v153, %v169
    %v178 = vxor.u32 %v154, %v170
    %v179 = vxor.u32 %v155, %v171
    %v180 = vxor.u32 %v156, %v172
    %v181 = vxor.u32 %v157, %v173
    %v182 = vxor.u32 %v158, %v174
    %v183 = vxor.u32 %v159, %v175
    %v184 = vxor.u32 %v160, %v176
    %v185 = vmul.u32 %v177, 2146121005
    %v186 = vmul.u32 %v178, 2146121005
    %v187 = vmul.u32 %v179, 2146121005
    %v188 = vmul.u32 %v180, 2146121005
    %v189 = vmul.u32 %v181, 2146121005
    %v190 = vmul.u32 %v182, 2146121005
    %v191 = vmul.u32 %v183, 2146121005
    %v192 = vmul.u32 %v184, 2146121005
    %v193 = vshra.s32 %v185, 15
    %v194 = vshra.s32 %v186, 15
    %v195 = vshra.s32 %v187, 15
    %v196 = vshra.s32 %v188, 15
    %v197 = vshra.s32 %v189, 15
    %v198 = vshra.s32 %v190, 15
    %v199 = vshra.s32 %v191, 15
    %v200 = vshra.s32 %v192, 15
    %v201 = vand.u32 %v193, 131071
    %v202 = vand.u32 %v194, 131071
    %v203 = vand.u32 %v195, 131071
    %v204 = vand.u32 %v196, 131071
    %v205 = vand.u32 %v197, 131071
    %v206 = vand.u32 %v198, 131071
    %v207 = vand.u32 %v199, 131071
    %v208 = vand.u32 %v200, 131071
    %v209 = vxor.u32 %v185, %v201
    %v210 = vxor.u32 %v186, %v202
    %v211 = vxor.u32 %v187, %v203
    %v212 = vxor.u32 %v188, %v204
    %v213 = vxor.u32 %v189, %v205
    %v214 = vxor.u32 %v190, %v206
    %v215 = vxor.u32 %v191, %v207
    %v216 = vxor.u32 %v192, %v208
    %v217 = vmul.u32 %v209, 2221713035
    %v218 = vmul.u32 %v210, 2221713035
    %v219 = vmul.u32 %v211, 2221713035
    %v220 = vmul.u32 %v212, 2221713035
    %v221 = vmul.u32 %v213, 2221713035
    %v222 = vmul.u32 %v214, 2221713035
    %v223 = vmul.u32 %v215, 2221713035
    %v224 = vmul.u32 %v216, 2221713035
    %v225 = vshra.s32 %v217, 16
    %v226 = vshra.s32 %v218, 16
    %v227 = vshra.s32 %v219, 16
    %v228 = vshra.s32 %v220, 16
    %v229 = vshra.s32 %v221, 16
    %v230 = vshra.s32 %v222, 16
    %v231 = vshra.s32 %v223, 16
    %v232 = vshra.s32 %v224, 16
    %v233 = vand.u32 %v225, 65535
    %v234 = vand.u32 %v226, 65535
    %v235 = vand.u32 %v227, 65535
    %v236 = vand.u32 %v228, 65535
    %v237 = vand.u32 %v229, 65535
    %v238 = vand.u32 %v230, 65535
    %v239 = vand.u32 %v231, 65535
    %v240 = vand.u32 %v232, 65535
    %v241 = vxor.u32 %v217, %v233
    %v242 = vxor.u32 %v218, %v234
    %v243 = vxor.u32 %v219, %v235
    %v244 = vxor.u32 %v220, %v236
    %v245 = vxor.u32 %v221, %v237
    %v246 = vxor.u32 %v222, %v238
    %v247 = vxor.u32 %v223, %v239
    %v248 = vxor.u32 %v224, %v240
    %v249 = vand.u32 %v145, 16777215
    %v250 = vand.u32 %v146, 16777215
    %v251 = vand.u32 %v147, 16777215
    %v252 = vand.u32 %v148, 16777215
    %v253 = vand.u32 %v149, 16777215
    %v254 = vand.u32 %v150, 16777215
    %v255 = vand.u32 %v151, 16777215
    %v256 = vand.u32 %v152, 16777215
    %v257 = vcvt.s32.f32 %v249
    %v258 = vcvt.s32.f32 %v250
    %v259 = vcvt.s32.f32 %v251
    %v260 = vcvt.s32.f32 %v252
    %v261 = vcvt.s32.f32 %v253
    %v262 = vcvt.s32.f32 %v254
    %v263 = vcvt.s32.f32 %v255
    %v264 = vcvt.s32.f32 %v256
    %v265 = vadd.f32 %v257, 0.5
    %v266 = vadd.f32 %v258, 0.5
    %v267 = vadd.f32 %v259, 0.5
    %v268 = vadd.f32 %v260, 0.5
    %v269 = vadd.f32 %v261, 0.5
    %v270 = vadd.f32 %v262, 0.5
    %v271 = vadd.f32 %v263, 0.5
    %v272 = vadd.f32 %v264, 0.5
    %v273 = vmul.f32 %v265, 5.9604645e-08
    %v274 = vmul.f32 %v266, 5.9604645e-08
    %v275 = vmul.f32 %v267, 5.9604645e-08
    %v276 = vmul.f32 %v268, 5.9604645e-08
    %v277 = vmul.f32 %v269, 5.9604645e-08
    %v278 = vmul.f32 %v270, 5.9604645e-08
    %v279 = vmul.f32 %v271, 5.9604645e-08
    %v280 = vmul.f32 %v272, 5.9604645e-08
    %v281 = vand.u32 %v241, 16777215
    %v282 = vand.u32 %v242, 16777215
    %v283 = vand.u32 %v243, 16777215
    %v284 = vand.u32 %v244, 16777215
    %v285 = vand.u32 %v245, 16777215
    %v286 = vand.u32 %v246, 16777215
    %v287 = vand.u32 %v247, 16777215
    %v288 = vand.u32 %v248, 16777215
    %v289 = vcvt.s32.f32 %v281
    %v290 = vcvt.s32.f32 %v282
    %v291 = vcvt.s32.f32 %v283
    %v292 = vcvt.s32.f32 %v284
    %v293 = vcvt.s32.f32 %v285
    %v294 = vcvt.s32.f32 %v286
    %v295 = vcvt.s32.f32 %v287
    %v296 = vcvt.s32.f32 %v288
    %v297 = vadd.f32 %v289, 0.5
    %v298 = vadd.f32 %v290, 0.5
    %v299 = vadd.f32 %v291, 0.5
    %v300 = vadd.f32 %v292, 0.5
    %v301 = vadd.f32 %v293, 0.5
    %v302 = vadd.f32 %v294, 0.5
    %v303 = vadd.f32 %v295, 0.5
    %v304 = vadd.f32 %v296, 0.5
    %v305 = vmul.f32 %v297, 5.9604645e-08
    %v306 = vmul.f32 %v298, 5.9604645e-08
    %v307 = vmul.f32 %v299, 5.9604645e-08
    %v308 = vmul.f32 %v300, 5.9604645e-08
    %v309 = vmul.f32 %v301, 5.9604645e-08
    %v310 = vmul.f32 %v302, 5.9604645e-08
    %v311 = vmul.f32 %v303, 5.9604645e-08
    %v312 = vmul.f32 %v304, 5.9604645e-08
    %v313 = vlog2.pop %v273
    %v314 = vmul.f32 %v313, 0.6931472
    %v315 = vlog2.pop %v274
    %v316 = vmul.f32 %v315, 0.6931472
    %v317 = vlog2.pop %v275
    %v318 = vmul.f32 %v317, 0.6931472
    %v319 = vlog2.pop %v276
    %v320 = vmul.f32 %v319, 0.6931472
    %v321 = vlog2.pop %v277
    %v322 = vmul.f32 %v321, 0.6931472
    %v323 = vlog2.pop %v278
    %v324 = vmul.f32 %v323, 0.6931472
    %v325 = vlog2.pop %v279
    %v326 = vmul.f32 %v325, 0.6931472
    %v327 = vlog2.pop %v280
    %v328 = vmul.f32 %v327, 0.6931472
    %v329 = vmul.f32 %v314, -2.0
    %v330 = vmul.f32 %v316, -2.0
    %v331 = vmul.f32 %v318, -2.0
    %v332 = vmul.f32 %v320, -2.0
    %v333 = vmul.f32 %v322, -2.0
    %v334 = vmul.f32 %v324, -2.0
    %v335 = vmul.f32 %v326, -2.0
    %v336 = vmul.f32 %v328, -2.0
    %v337 = vrsqrt.pop %v329
    %v338 = vmul.f32 %v329, %v337
    %vm339 = vcmp.eq.f32.partialorder %v329, inf
    %v340 = vsel %vm339, %v329, %v338
    %vm341 = vcmp.eq.f32.partialorder %v329, 0.0
    %v342 = vand.u32 %v329, 2147483648
    %v343 = vsel %vm341, %v342, %v340
    %v344 = vrsqrt.pop %v330
    %v345 = vmul.f32 %v330, %v344
    %vm346 = vcmp.eq.f32.partialorder %v330, inf
    %v347 = vsel %vm346, %v330, %v345
    %vm348 = vcmp.eq.f32.partialorder %v330, 0.0
    %v349 = vand.u32 %v330, 2147483648
    %v350 = vsel %vm348, %v349, %v347
    %v351 = vrsqrt.pop %v331
    %v352 = vmul.f32 %v331, %v351
    %vm353 = vcmp.eq.f32.partialorder %v331, inf
    %v354 = vsel %vm353, %v331, %v352
    %vm355 = vcmp.eq.f32.partialorder %v331, 0.0
    %v356 = vand.u32 %v331, 2147483648
    %v357 = vsel %vm355, %v356, %v354
    %v358 = vrsqrt.pop %v332
    %v359 = vmul.f32 %v332, %v358
    %vm360 = vcmp.eq.f32.partialorder %v332, inf
    %v361 = vsel %vm360, %v332, %v359
    %vm362 = vcmp.eq.f32.partialorder %v332, 0.0
    %v363 = vand.u32 %v332, 2147483648
    %v364 = vsel %vm362, %v363, %v361
    %v365 = vrsqrt.pop %v333
    %v366 = vmul.f32 %v333, %v365
    %vm367 = vcmp.eq.f32.partialorder %v333, inf
    %v368 = vsel %vm367, %v333, %v366
    %vm369 = vcmp.eq.f32.partialorder %v333, 0.0
    %v370 = vand.u32 %v333, 2147483648
    %v371 = vsel %vm369, %v370, %v368
    %v372 = vrsqrt.pop %v334
    %v373 = vmul.f32 %v334, %v372
    %vm374 = vcmp.eq.f32.partialorder %v334, inf
    %v375 = vsel %vm374, %v334, %v373
    %vm376 = vcmp.eq.f32.partialorder %v334, 0.0
    %v377 = vand.u32 %v334, 2147483648
    %v378 = vsel %vm376, %v377, %v375
    %v379 = vrsqrt.pop %v335
    %v380 = vmul.f32 %v335, %v379
    %vm381 = vcmp.eq.f32.partialorder %v335, inf
    %v382 = vsel %vm381, %v335, %v380
    %vm383 = vcmp.eq.f32.partialorder %v335, 0.0
    %v384 = vand.u32 %v335, 2147483648
    %v385 = vsel %vm383, %v384, %v382
    %v386 = vrsqrt.pop %v336
    %v387 = vmul.f32 %v336, %v386
    %vm388 = vcmp.eq.f32.partialorder %v336, inf
    %v389 = vsel %vm388, %v336, %v387
    %vm390 = vcmp.eq.f32.partialorder %v336, 0.0
    %v391 = vand.u32 %v336, 2147483648
    %v392 = vsel %vm390, %v391, %v389
    %v393 = vmul.f32 %v305, 6.2831855
    %v394 = vmul.f32 %v306, 6.2831855
    %v395 = vmul.f32 %v307, 6.2831855
    %v396 = vmul.f32 %v308, 6.2831855
    %v397 = vmul.f32 %v309, 6.2831855
    %v398 = vmul.f32 %v310, 6.2831855
    %v399 = vmul.f32 %v311, 6.2831855
    %v400 = vmul.f32 %v312, 6.2831855
    %v401 = vand.u32 2147483647, %v393
    %vm402 = vcmp.le.f32.partialorder %v401, 0.7853982
    %vm403 = vcmp.lt.s32.totalorder %v393, 0
    %v404 = vand.u32 %v393, 2139095040
    %v405 = vshrl.u32 %v404, 23
    %v406 = vsub.s32 %v405, 127
    %v407 = vand.u32 2147483647, %v393
    %v408 = vand.u32 %v407, 8388607
    %v409 = vor.u32 %v408, 8388608
    %v410 = vsub.s32 0, %v409
    %v411 = vadd.s32 %v406, 1
    %vm412 = vcmp.gt.s32.totalorder %v411, 0
    %v413 = vsel %vm412, %v411, 0
    %v414 = vshrl.u32 %v413, 5
    %v415 = vand.u32 %v413, 31
    %v416 = vsub.s32 32, %v415
    %v417 = vshrl.u32 683565275, %v416
    %v418 = vshll.u32 683565275, %v415
    %v419 = vshrl.u32 2475754826, %v416
    %v420 = vor.u32 %v418, %v419
    %v421 = vshll.u32 2475754826, %v415
    %v422 = vshrl.u32 2131351028, %v416
    %v423 = vor.u32 %v421, %v422
    %v424 = vshll.u32 2131351028, %v415
    %v425 = vshrl.u32 2102212464, %v416
    %v426 = vor.u32 %v424, %v425
    %v427 = vshll.u32 2102212464, %v415
    %v428 = vshrl.u32 920167782, %v416
    %v429 = vor.u32 %v427, %v428
    %v430 = vshll.u32 920167782, %v415
    %v431 = vshrl.u32 1326507024, %v416
    %v432 = vor.u32 %v430, %v431
    %vm433 = vcmp.lt.s32.totalorder %v414, 1
    %vm434 = vcmp.lt.s32.totalorder %v414, 2
    %vm435 = vcmp.lt.s32.totalorder %v414, 3
    %vm436 = vcmp.lt.s32.totalorder %v414, 4
    %v437 = vsel %vm433, %v417, %v420
    %v438 = vsel %vm436, %v426, 2102212464
    %v439 = vsel %vm435, %v423, %v438
    %v440 = vsel %vm434, %v437, %v439
    %v441 = vsel %vm433, %v420, %v423
    %v442 = vsel %vm436, %v429, 920167782
    %v443 = vsel %vm435, %v426, %v442
    %v444 = vsel %vm434, %v441, %v443
    %v445 = vsel %vm433, %v423, %v426
    %v446 = vsel %vm436, %v432, 1326507024
    %v447 = vsel %vm435, %v429, %v446
    %v448 = vsel %vm434, %v445, %v447
    %v449 = vshll.u32 %v409, 8
    %v450 = vmul.u32.u64.compose %v449, %v448
    %v451 = vextract.low.u32 %v450
    %v452 = vextract.high.u32 %v450
    %v453 = vmul.u32.u64.compose %v449, %v444
    %v454 = vextract.low.u32 %v453
    %v455 = vextract.high.u32 %v453
    %v456 = vmul.u32 %v449, %v440
    %v457 = vadd.s32 %v452, %v454
    %vm458 = vc.u32 %v452, %v454
    %v459 = vadd.s32 %v455, 1
    %v460 = vsel %vm458, %v459, %v455
    %v461 = vadd.s32 %v456, %v460
    %v462 = vadd.s32 %v461, 536870912
    %v463 = vshrl.u32 %v462, 30
    %v464 = vshll.u32 %v463, 30
    %v465 = vsub.s32 %v461, %v464
    %vm466 = vcmp.lt.s32.totalorder %v465, 0
    %v467 = vsub.s32 0, %v465
    %v468 = vsel %vm466, %v467, %v465
    %v469 = vclz %v468
    %v470 = vsub.s32 %v469, 2
    %vm471 = vcmp.gt.s32.totalorder 0, %v470
    %v472 = vsel %vm471, 0, %v470
    %v473 = vsub.s32 32, %v472
    %v474 = vshll.u32 %v465, %v472
    %v475 = vshrl.u32 %v457, %v473
    %v476 = vor.u32 %v474, %v475
    %v477 = vsub.s32 4294967266, %v472
    %v478 = vadd.s32 %v477, 127
    %v479 = vshll.u32 %v478, 23
    %v480 = vor.u32 4788187, %v479
    %v481 = vand.u32 2147483647, %v480
    %v483 = vcvt.s32.f32 %v476
    %v484 = vmul.f32 %v483, %v481
    %v485 = vxor.u32 %v484, 2147483648
    %v486 = vsel %vm403, %v485, %v484
    %v487 = vsub.s32 4, %v463
    %v488 = vsel %vm403, %v487, %v463
    %v489 = vsel %vm402, %v393, %v486
    %v490 = vsel %vm402, 0, %v488
    %v491 = vcosq.f32.pop %v489
    %v492 = vsinq.f32.pop %v489
    %vm493 = vweird.f32 %v393
    %v494 = vand.u32 %v490, 3
    %vm495 = vcmp.lt.s32.totalorder %v494, 2
    %vm496 = vcmp.eq.s32.totalorder %v494, 0
    %v497 = vxor.u32 %v492, 2147483648
    %v498 = vsel %vm496, %v491, %v497
    %vm499 = vcmp.eq.s32.totalorder %v494, 2
    %v500 = vxor.u32 %v491, 2147483648
    %v501 = vsel %vm499, %v500, %v492
    %v502 = vsel %vm495, %v498, %v501
    %v503 = vsel %vm493, nan, %v502
    %v504 = vand.u32 2147483647, %v394
    %vm505 = vcmp.le.f32.partialorder %v504, 0.7853982
    %vm506 = vcmp.lt.s32.totalorder %v394, 0
    %v507 = vand.u32 %v394, 2139095040
    %v508 = vshrl.u32 %v507, 23
    %v509 = vsub.s32 %v508, 127
    %v510 = vand.u32 2147483647, %v394
    %v511 = vand.u32 %v510, 8388607
    %v512 = vor.u32 %v511, 8388608
    %v513 = vsub.s32 0, %v512
    %v514 = vadd.s32 %v509, 1
    %vm515 = vcmp.gt.s32.totalorder %v514, 0
    %v516 = vsel %vm515, %v514, 0
    %v517 = vshrl.u32 %v516, 5
    %v518 = vand.u32 %v516, 31
    %v519 = vsub.s32 32, %v518
    %v520 = vshrl.u32 683565275, %v519
    %v521 = vshll.u32 683565275, %v518
    %v522 = vshrl.u32 2475754826, %v519
    %v523 = vor.u32 %v521, %v522
    %v524 = vshll.u32 2475754826, %v518
    %v525 = vshrl.u32 2131351028, %v519
    %v526 = vor.u32 %v524, %v525
    %v527 = vshll.u32 2131351028, %v518
    %v528 = vshrl.u32 2102212464, %v519
    %v529 = vor.u32 %v527, %v528
    %v530 = vshll.u32 2102212464, %v518
    %v531 = vshrl.u32 920167782, %v519
    %v532 = vor.u32 %v530, %v531
    %v533 = vshll.u32 920167782, %v518
    %v534 = vshrl.u32 1326507024, %v519
    %v535 = vor.u32 %v533, %v534
    %vm536 = vcmp.lt.s32.totalorder %v517, 1
    %vm537 = vcmp.lt.s32.totalorder %v517, 2
    %vm538 = vcmp.lt.s32.totalorder %v517, 3
    %vm539 = vcmp.lt.s32.totalorder %v517, 4
    %v540 = vsel %vm536, %v520, %v523
    %v541 = vsel %vm539, %v529, 2102212464
    %v542 = vsel %vm538, %v526, %v541
    %v543 = vsel %vm537, %v540, %v542
    %v544 = vsel %vm536, %v523, %v526
    %v545 = vsel %vm539, %v532, 920167782
    %v546 = vsel %vm538, %v529, %v545
    %v547 = vsel %vm537, %v544, %v546
    %v548 = vsel %vm536, %v526, %v529
    %v549 = vsel %vm539, %v535, 1326507024
    %v550 = vsel %vm538, %v532, %v549
    %v551 = vsel %vm537, %v548, %v550
    %v552 = vshll.u32 %v512, 8
    %v553 = vmul.u32.u64.compose %v552, %v551
    %v554 = vextract.low.u32 %v553
    %v555 = vextract.high.u32 %v553
    %v556 = vmul.u32.u64.compose %v552, %v547
    %v557 = vextract.low.u32 %v556
    %v558 = vextract.high.u32 %v556
    %v559 = vmul.u32 %v552, %v543
    %v560 = vadd.s32 %v555, %v557
    %vm561 = vc.u32 %v555, %v557
    %v562 = vadd.s32 %v558, 1
    %v563 = vsel %vm561, %v562, %v558
    %v564 = vadd.s32 %v559, %v563
    %v565 = vadd.s32 %v564, 536870912
    %v566 = vshrl.u32 %v565, 30
    %v567 = vshll.u32 %v566, 30
    %v568 = vsub.s32 %v564, %v567
    %vm569 = vcmp.lt.s32.totalorder %v568, 0
    %v570 = vsub.s32 0, %v568
    %v571 = vsel %vm569, %v570, %v568
    %v572 = vclz %v571
    %v573 = vsub.s32 %v572, 2
    %vm574 = vcmp.gt.s32.totalorder 0, %v573
    %v575 = vsel %vm574, 0, %v573
    %v576 = vsub.s32 32, %v575
    %v577 = vshll.u32 %v568, %v575
    %v578 = vshrl.u32 %v560, %v576
    %v579 = vor.u32 %v577, %v578
    %v580 = vsub.s32 4294967266, %v575
    %v581 = vadd.s32 %v580, 127
    %v582 = vshll.u32 %v581, 23
    %v583 = vor.u32 4788187, %v582
    %v584 = vand.u32 2147483647, %v583
    %v586 = vcvt.s32.f32 %v579
    %v587 = vmul.f32 %v586, %v584
    %v588 = vxor.u32 %v587, 2147483648
    %v589 = vsel %vm506, %v588, %v587
    %v590 = vsub.s32 4, %v566
    %v591 = vsel %vm506, %v590, %v566
    %v592 = vsel %vm505, %v394, %v589
    %v593 = vsel %vm505, 0, %v591
    %v594 = vcosq.f32.pop %v592
    %v595 = vsinq.f32.pop %v592
    %vm596 = vweird.f32 %v394
    %v597 = vand.u32 %v593, 3
    %vm598 = vcmp.lt.s32.totalorder %v597, 2
    %vm599 = vcmp.eq.s32.totalorder %v597, 0
    %v600 = vxor.u32 %v595, 2147483648
    %v601 = vsel %vm599, %v594, %v600
    %vm602 = vcmp.eq.s32.totalorder %v597, 2
    %v603 = vxor.u32 %v594, 2147483648
    %v604 = vsel %vm602, %v603, %v595
    %v605 = vsel %vm598, %v601, %v604
    %v606 = vsel %vm596, nan, %v605
    %v607 = vand.u32 2147483647, %v395
    %vm608 = vcmp.le.f32.partialorder %v607, 0.7853982
    %vm609 = vcmp.lt.s32.totalorder %v395, 0
    %v610 = vand.u32 %v395, 2139095040
    %v611 = vshrl.u32 %v610, 23
    %v612 = vsub.s32 %v611, 127
    %v613 = vand.u32 2147483647, %v395
    %v614 = vand.u32 %v613, 8388607
    %v615 = vor.u32 %v614, 8388608
    %v616 = vsub.s32 0, %v615
    %v617 = vadd.s32 %v612, 1
    %vm618 = vcmp.gt.s32.totalorder %v617, 0
    %v619 = vsel %vm618, %v617, 0
    %v620 = vshrl.u32 %v619, 5
    %v621 = vand.u32 %v619, 31
    %v622 = vsub.s32 32, %v621
    %v623 = vshrl.u32 683565275, %v622
    %v624 = vshll.u32 683565275, %v621
    %v625 = vshrl.u32 2475754826, %v622
    %v626 = vor.u32 %v624, %v625
    %v627 = vshll.u32 2475754826, %v621
    %v628 = vshrl.u32 2131351028, %v622
    %v629 = vor.u32 %v627, %v628
    %v630 = vshll.u32 2131351028, %v621
    %v631 = vshrl.u32 2102212464, %v622
    %v632 = vor.u32 %v630, %v631
    %v633 = vshll.u32 2102212464, %v621
    %v634 = vshrl.u32 920167782, %v622
    %v635 = vor.u32 %v633, %v634
    %v636 = vshll.u32 920167782, %v621
    %v637 = vshrl.u32 1326507024, %v622
    %v638 = vor.u32 %v636, %v637
    %vm639 = vcmp.lt.s32.totalorder %v620, 1
    %vm640 = vcmp.lt.s32.totalorder %v620, 2
    %vm641 = vcmp.lt.s32.totalorder %v620, 3
    %vm642 = vcmp.lt.s32.totalorder %v620, 4
    %v643 = vsel %vm639, %v623, %v626
    %v644 = vsel %vm642, %v632, 2102212464
    %v645 = vsel %vm641, %v629, %v644
    %v646 = vsel %vm640, %v643, %v645
    %v647 = vsel %vm639, %v626, %v629
    %v648 = vsel %vm642, %v635, 920167782
    %v649 = vsel %vm641, %v632, %v648
    %v650 = vsel %vm640, %v647, %v649
    %v651 = vsel %vm639, %v629, %v632
    %v652 = vsel %vm642, %v638, 1326507024
    %v653 = vsel %vm641, %v635, %v652
    %v654 = vsel %vm640, %v651, %v653
    %v655 = vshll.u32 %v615, 8
    %v656 = vmul.u32.u64.compose %v655, %v654
    %v657 = vextract.low.u32 %v656
    %v658 = vextract.high.u32 %v656
    %v659 = vmul.u32.u64.compose %v655, %v650
    %v660 = vextract.low.u32 %v659
    %v661 = vextract.high.u32 %v659
    %v662 = vmul.u32 %v655, %v646
    %v663 = vadd.s32 %v658, %v660
    %vm664 = vc.u32 %v658, %v660
    %v665 = vadd.s32 %v661, 1
    %v666 = vsel %vm664, %v665, %v661
    %v667 = vadd.s32 %v662, %v666
    %v668 = vadd.s32 %v667, 536870912
    %v669 = vshrl.u32 %v668, 30
    %v670 = vshll.u32 %v669, 30
    %v671 = vsub.s32 %v667, %v670
    %vm672 = vcmp.lt.s32.totalorder %v671, 0
    %v673 = vsub.s32 0, %v671
    %v674 = vsel %vm672, %v673, %v671
    %v675 = vclz %v674
    %v676 = vsub.s32 %v675, 2
    %vm677 = vcmp.gt.s32.totalorder 0, %v676
    %v678 = vsel %vm677, 0, %v676
    %v679 = vsub.s32 32, %v678
    %v680 = vshll.u32 %v671, %v678
    %v681 = vshrl.u32 %v663, %v679
    %v682 = vor.u32 %v680, %v681
    %v683 = vsub.s32 4294967266, %v678
    %v684 = vadd.s32 %v683, 127
    %v685 = vshll.u32 %v684, 23
    %v686 = vor.u32 4788187, %v685
    %v687 = vand.u32 2147483647, %v686
    %v689 = vcvt.s32.f32 %v682
    %v690 = vmul.f32 %v689, %v687
    %v691 = vxor.u32 %v690, 2147483648
    %v692 = vsel %vm609, %v691, %v690
    %v693 = vsub.s32 4, %v669
    %v694 = vsel %vm609, %v693, %v669
    %v695 = vsel %vm608, %v395, %v692
    %v696 = vsel %vm608, 0, %v694
    %v697 = vcosq.f32.pop %v695
    %v698 = vsinq.f32.pop %v695
    %vm699 = vweird.f32 %v395
    %v700 = vand.u32 %v696, 3
    %vm701 = vcmp.lt.s32.totalorder %v700, 2
    %vm702 = vcmp.eq.s32.totalorder %v700, 0
    %v703 = vxor.u32 %v698, 2147483648
    %v704 = vsel %vm702, %v697, %v703
    %vm705 = vcmp.eq.s32.totalorder %v700, 2
    %v706 = vxor.u32 %v697, 2147483648
    %v707 = vsel %vm705, %v706, %v698
    %v708 = vsel %vm701, %v704, %v707
    %v709 = vsel %vm699, nan, %v708
    %v710 = vand.u32 2147483647, %v396
    %vm711 = vcmp.le.f32.partialorder %v710, 0.7853982
    %vm712 = vcmp.lt.s32.totalorder %v396, 0
    %v713 = vand.u32 %v396, 2139095040
    %v714 = vshrl.u32 %v713, 23
    %v715 = vsub.s32 %v714, 127
    %v716 = vand.u32 2147483647, %v396
    %v717 = vand.u32 %v716, 8388607
    %v718 = vor.u32 %v717, 8388608
    %v719 = vsub.s32 0, %v718
    %v720 = vadd.s32 %v715, 1
    %vm721 = vcmp.gt.s32.totalorder %v720, 0
    %v722 = vsel %vm721, %v720, 0
    %v723 = vshrl.u32 %v722, 5
    %v724 = vand.u32 %v722, 31
    %v725 = vsub.s32 32, %v724
    %v726 = vshrl.u32 683565275, %v725
    %v727 = vshll.u32 683565275, %v724
    %v728 = vshrl.u32 2475754826, %v725
    %v729 = vor.u32 %v727, %v728
    %v730 = vshll.u32 2475754826, %v724
    %v731 = vshrl.u32 2131351028, %v725
    %v732 = vor.u32 %v730, %v731
    %v733 = vshll.u32 2131351028, %v724
    %v734 = vshrl.u32 2102212464, %v725
    %v735 = vor.u32 %v733, %v734
    %v736 = vshll.u32 2102212464, %v724
    %v737 = vshrl.u32 920167782, %v725
    %v738 = vor.u32 %v736, %v737
    %v739 = vshll.u32 920167782, %v724
    %v740 = vshrl.u32 1326507024, %v725
    %v741 = vor.u32 %v739, %v740
    %vm742 = vcmp.lt.s32.totalorder %v723, 1
    %vm743 = vcmp.lt.s32.totalorder %v723, 2
    %vm744 = vcmp.lt.s32.totalorder %v723, 3
    %vm745 = vcmp.lt.s32.totalorder %v723, 4
    %v746 = vsel %vm742, %v726, %v729
    %v747 = vsel %vm745, %v735, 2102212464
    %v748 = vsel %vm744, %v732, %v747
    %v749 = vsel %vm743, %v746, %v748
    %v750 = vsel %vm742, %v729, %v732
    %v751 = vsel %vm745, %v738, 920167782
    %v752 = vsel %vm744, %v735, %v751
    %v753 = vsel %vm743, %v750, %v752
    %v754 = vsel %vm742, %v732, %v735
    %v755 = vsel %vm745, %v741, 1326507024
    %v756 = vsel %vm744, %v738, %v755
    %v757 = vsel %vm743, %v754, %v756
    %v758 = vshll.u32 %v718, 8
    %v759 = vmul.u32.u64.compose %v758, %v757
    %v760 = vextract.low.u32 %v759
    %v761 = vextract.high.u32 %v759
    %v762 = vmul.u32.u64.compose %v758, %v753
    %v763 = vextract.low.u32 %v762
    %v764 = vextract.high.u32 %v762
    %v765 = vmul.u32 %v758, %v749
    %v766 = vadd.s32 %v761, %v763
    %vm767 = vc.u32 %v761, %v763
    %v768 = vadd.s32 %v764, 1
    %v769 = vsel %vm767, %v768, %v764
    %v770 = vadd.s32 %v765, %v769
    %v771 = vadd.s32 %v770, 536870912
    %v772 = vshrl.u32 %v771, 30
    %v773 = vshll.u32 %v772, 30
    %v774 = vsub.s32 %v770, %v773
    %vm775 = vcmp.lt.s32.totalorder %v774, 0
    %v776 = vsub.s32 0, %v774
    %v777 = vsel %vm775, %v776, %v774
    %v778 = vclz %v777
    %v779 = vsub.s32 %v778, 2
    %vm780 = vcmp.gt.s32.totalorder 0, %v779
    %v781 = vsel %vm780, 0, %v779
    %v782 = vsub.s32 32, %v781
    %v783 = vshll.u32 %v774, %v781
    %v784 = vshrl.u32 %v766, %v782
    %v785 = vor.u32 %v783, %v784
    %v786 = vsub.s32 4294967266, %v781
    %v787 = vadd.s32 %v786, 127
    %v788 = vshll.u32 %v787, 23
    %v789 = vor.u32 4788187, %v788
    %v790 = vand.u32 2147483647, %v789
    %v792 = vcvt.s32.f32 %v785
    %v793 = vmul.f32 %v792, %v790
    %v794 = vxor.u32 %v793, 2147483648
    %v795 = vsel %vm712, %v794, %v793
    %v796 = vsub.s32 4, %v772
    %v797 = vsel %vm712, %v796, %v772
    %v798 = vsel %vm711, %v396, %v795
    %v799 = vsel %vm711, 0, %v797
    %v800 = vcosq.f32.pop %v798
    %v801 = vsinq.f32.pop %v798
    %vm802 = vweird.f32 %v396
    %v803 = vand.u32 %v799, 3
    %vm804 = vcmp.lt.s32.totalorder %v803, 2
    %vm805 = vcmp.eq.s32.totalorder %v803, 0
    %v806 = vxor.u32 %v801, 2147483648
    %v807 = vsel %vm805, %v800, %v806
    %vm808 = vcmp.eq.s32.totalorder %v803, 2
    %v809 = vxor.u32 %v800, 2147483648
    %v810 = vsel %vm808, %v809, %v801
    %v811 = vsel %vm804, %v807, %v810
    %v812 = vsel %vm802, nan, %v811
    %v813 = vand.u32 2147483647, %v397
    %vm814 = vcmp.le.f32.partialorder %v813, 0.7853982
    %vm815 = vcmp.lt.s32.totalorder %v397, 0
    %v816 = vand.u32 %v397, 2139095040
    %v817 = vshrl.u32 %v816, 23
    %v818 = vsub.s32 %v817, 127
    %v819 = vand.u32 2147483647, %v397
    %v820 = vand.u32 %v819, 8388607
    %v821 = vor.u32 %v820, 8388608
    %v822 = vsub.s32 0, %v821
    %v823 = vadd.s32 %v818, 1
    %vm824 = vcmp.gt.s32.totalorder %v823, 0
    %v825 = vsel %vm824, %v823, 0
    %v826 = vshrl.u32 %v825, 5
    %v827 = vand.u32 %v825, 31
    %v828 = vsub.s32 32, %v827
    %v829 = vshrl.u32 683565275, %v828
    %v830 = vshll.u32 683565275, %v827
    %v831 = vshrl.u32 2475754826, %v828
    %v832 = vor.u32 %v830, %v831
    %v833 = vshll.u32 2475754826, %v827
    %v834 = vshrl.u32 2131351028, %v828
    %v835 = vor.u32 %v833, %v834
    %v836 = vshll.u32 2131351028, %v827
    %v837 = vshrl.u32 2102212464, %v828
    %v838 = vor.u32 %v836, %v837
    %v839 = vshll.u32 2102212464, %v827
    %v840 = vshrl.u32 920167782, %v828
    %v841 = vor.u32 %v839, %v840
    %v842 = vshll.u32 920167782, %v827
    %v843 = vshrl.u32 1326507024, %v828
    %v844 = vor.u32 %v842, %v843
    %vm845 = vcmp.lt.s32.totalorder %v826, 1
    %vm846 = vcmp.lt.s32.totalorder %v826, 2
    %vm847 = vcmp.lt.s32.totalorder %v826, 3
    %vm848 = vcmp.lt.s32.totalorder %v826, 4
    %v849 = vsel %vm845, %v829, %v832
    %v850 = vsel %vm848, %v838, 2102212464
    %v851 = vsel %vm847, %v835, %v850
    %v852 = vsel %vm846, %v849, %v851
    %v853 = vsel %vm845, %v832, %v835
    %v854 = vsel %vm848, %v841, 920167782
    %v855 = vsel %vm847, %v838, %v854
    %v856 = vsel %vm846, %v853, %v855
    %v857 = vsel %vm845, %v835, %v838
    %v858 = vsel %vm848, %v844, 1326507024
    %v859 = vsel %vm847, %v841, %v858
    %v860 = vsel %vm846, %v857, %v859
    %v861 = vshll.u32 %v821, 8
    %v862 = vmul.u32.u64.compose %v861, %v860
    %v863 = vextract.low.u32 %v862
    %v864 = vextract.high.u32 %v862
    %v865 = vmul.u32.u64.compose %v861, %v856
    %v866 = vextract.low.u32 %v865
    %v867 = vextract.high.u32 %v865
    %v868 = vmul.u32 %v861, %v852
    %v869 = vadd.s32 %v864, %v866
    %vm870 = vc.u32 %v864, %v866
    %v871 = vadd.s32 %v867, 1
    %v872 = vsel %vm870, %v871, %v867
    %v873 = vadd.s32 %v868, %v872
    %v874 = vadd.s32 %v873, 536870912
    %v875 = vshrl.u32 %v874, 30
    %v876 = vshll.u32 %v875, 30
    %v877 = vsub.s32 %v873, %v876
    %vm878 = vcmp.lt.s32.totalorder %v877, 0
    %v879 = vsub.s32 0, %v877
    %v880 = vsel %vm878, %v879, %v877
    %v881 = vclz %v880
    %v882 = vsub.s32 %v881, 2
    %vm883 = vcmp.gt.s32.totalorder 0, %v882
    %v884 = vsel %vm883, 0, %v882
    %v885 = vsub.s32 32, %v884
    %v886 = vshll.u32 %v877, %v884
    %v887 = vshrl.u32 %v869, %v885
    %v888 = vor.u32 %v886, %v887
    %v889 = vsub.s32 4294967266, %v884
    %v890 = vadd.s32 %v889, 127
    %v891 = vshll.u32 %v890, 23
    %v892 = vor.u32 4788187, %v891
    %v893 = vand.u32 2147483647, %v892
    %v895 = vcvt.s32.f32 %v888
    %v896 = vmul.f32 %v895, %v893
    %v897 = vxor.u32 %v896, 2147483648
    %v898 = vsel %vm815, %v897, %v896
    %v899 = vsub.s32 4, %v875
    %v900 = vsel %vm815, %v899, %v875
    %v901 = vsel %vm814, %v397, %v898
    %v902 = vsel %vm814, 0, %v900
    %v903 = vcosq.f32.pop %v901
    %v904 = vsinq.f32.pop %v901
    %vm905 = vweird.f32 %v397
    %v906 = vand.u32 %v902, 3
    %vm907 = vcmp.lt.s32.totalorder %v906, 2
    %vm908 = vcmp.eq.s32.totalorder %v906, 0
    %v909 = vxor.u32 %v904, 2147483648
    %v910 = vsel %vm908, %v903, %v909
    %vm911 = vcmp.eq.s32.totalorder %v906, 2
    %v912 = vxor.u32 %v903, 2147483648
    %v913 = vsel %vm911, %v912, %v904
    %v914 = vsel %vm907, %v910, %v913
    %v915 = vsel %vm905, nan, %v914
    %v916 = vand.u32 2147483647, %v398
    %vm917 = vcmp.le.f32.partialorder %v916, 0.7853982
    %vm918 = vcmp.lt.s32.totalorder %v398, 0
    %v919 = vand.u32 %v398, 2139095040
    %v920 = vshrl.u32 %v919, 23
    %v921 = vsub.s32 %v920, 127
    %v922 = vand.u32 2147483647, %v398
    %v923 = vand.u32 %v922, 8388607
    %v924 = vor.u32 %v923, 8388608
    %v925 = vsub.s32 0, %v924
    %v926 = vadd.s32 %v921, 1
    %vm927 = vcmp.gt.s32.totalorder %v926, 0
    %v928 = vsel %vm927, %v926, 0
    %v929 = vshrl.u32 %v928, 5
    %v930 = vand.u32 %v928, 31
    %v931 = vsub.s32 32, %v930
    %v932 = vshrl.u32 683565275, %v931
    %v933 = vshll.u32 683565275, %v930
    %v934 = vshrl.u32 2475754826, %v931
    %v935 = vor.u32 %v933, %v934
    %v936 = vshll.u32 2475754826, %v930
    %v937 = vshrl.u32 2131351028, %v931
    %v938 = vor.u32 %v936, %v937
    %v939 = vshll.u32 2131351028, %v930
    %v940 = vshrl.u32 2102212464, %v931
    %v941 = vor.u32 %v939, %v940
    %v942 = vshll.u32 2102212464, %v930
    %v943 = vshrl.u32 920167782, %v931
    %v944 = vor.u32 %v942, %v943
    %v945 = vshll.u32 920167782, %v930
    %v946 = vshrl.u32 1326507024, %v931
    %v947 = vor.u32 %v945, %v946
    %vm948 = vcmp.lt.s32.totalorder %v929, 1
    %vm949 = vcmp.lt.s32.totalorder %v929, 2
    %vm950 = vcmp.lt.s32.totalorder %v929, 3
    %vm951 = vcmp.lt.s32.totalorder %v929, 4
    %v952 = vsel %vm948, %v932, %v935
    %v953 = vsel %vm951, %v941, 2102212464
    %v954 = vsel %vm950, %v938, %v953
    %v955 = vsel %vm949, %v952, %v954
    %v956 = vsel %vm948, %v935, %v938
    %v957 = vsel %vm951, %v944, 920167782
    %v958 = vsel %vm950, %v941, %v957
    %v959 = vsel %vm949, %v956, %v958
    %v960 = vsel %vm948, %v938, %v941
    %v961 = vsel %vm951, %v947, 1326507024
    %v962 = vsel %vm950, %v944, %v961
    %v963 = vsel %vm949, %v960, %v962
    %v964 = vshll.u32 %v924, 8
    %v965 = vmul.u32.u64.compose %v964, %v963
    %v966 = vextract.low.u32 %v965
    %v967 = vextract.high.u32 %v965
    %v968 = vmul.u32.u64.compose %v964, %v959
    %v969 = vextract.low.u32 %v968
    %v970 = vextract.high.u32 %v968
    %v971 = vmul.u32 %v964, %v955
    %v972 = vadd.s32 %v967, %v969
    %vm973 = vc.u32 %v967, %v969
    %v974 = vadd.s32 %v970, 1
    %v975 = vsel %vm973, %v974, %v970
    %v976 = vadd.s32 %v971, %v975
    %v977 = vadd.s32 %v976, 536870912
    %v978 = vshrl.u32 %v977, 30
    %v979 = vshll.u32 %v978, 30
    %v980 = vsub.s32 %v976, %v979
    %vm981 = vcmp.lt.s32.totalorder %v980, 0
    %v982 = vsub.s32 0, %v980
    %v983 = vsel %vm981, %v982, %v980
    %v984 = vclz %v983
    %v985 = vsub.s32 %v984, 2
    %vm986 = vcmp.gt.s32.totalorder 0, %v985
    %v987 = vsel %vm986, 0, %v985
    %v988 = vsub.s32 32, %v987
    %v989 = vshll.u32 %v980, %v987
    %v990 = vshrl.u32 %v972, %v988
    %v991 = vor.u32 %v989, %v990
    %v992 = vsub.s32 4294967266, %v987
    %v993 = vadd.s32 %v992, 127
    %v994 = vshll.u32 %v993, 23
    %v995 = vor.u32 4788187, %v994
    %v996 = vand.u32 2147483647, %v995
    %v998 = vcvt.s32.f32 %v991
    %v999 = vmul.f32 %v998, %v996
    %v1000 = vxor.u32 %v999, 2147483648
    %v1001 = vsel %vm918, %v1000, %v999
    %v1002 = vsub.s32 4, %v978
    %v1003 = vsel %vm918, %v1002, %v978
    %v1004 = vsel %vm917, %v398, %v1001
    %v1005 = vsel %vm917, 0, %v1003
    %v1006 = vcosq.f32.pop %v1004
    %v1007 = vsinq.f32.pop %v1004
    %vm1008 = vweird.f32 %v398
    %v1009 = vand.u32 %v1005, 3
    %vm1010 = vcmp.lt.s32.totalorder %v1009, 2
    %vm1011 = vcmp.eq.s32.totalorder %v1009, 0
    %v1012 = vxor.u32 %v1007, 2147483648
    %v1013 = vsel %vm1011, %v1006, %v1012
    %vm1014 = vcmp.eq.s32.totalorder %v1009, 2
    %v1015 = vxor.u32 %v1006, 2147483648
    %v1016 = vsel %vm1014, %v1015, %v1007
    %v1017 = vsel %vm1010, %v1013, %v1016
    %v1018 = vsel %vm1008, nan, %v1017
    %v1019 = vand.u32 2147483647, %v399
    %vm1020 = vcmp.le.f32.partialorder %v1019, 0.7853982
    %vm1021 = vcmp.lt.s32.totalorder %v399, 0
    %v1022 = vand.u32 %v399, 2139095040
    %v1023 = vshrl.u32 %v1022, 23
    %v1024 = vsub.s32 %v1023, 127
    %v1025 = vand.u32 2147483647, %v399
    %v1026 = vand.u32 %v1025, 8388607
    %v1027 = vor.u32 %v1026, 8388608
    %v1028 = vsub.s32 0, %v1027
    %v1029 = vadd.s32 %v1024, 1
    %vm1030 = vcmp.gt.s32.totalorder %v1029, 0
    %v1031 = vsel %vm1030, %v1029, 0
    %v1032 = vshrl.u32 %v1031, 5
    %v1033 = vand.u32 %v1031, 31
    %v1034 = vsub.s32 32, %v1033
    %v1035 = vshrl.u32 683565275, %v1034
    %v1036 = vshll.u32 683565275, %v1033
    %v1037 = vshrl.u32 2475754826, %v1034
    %v1038 = vor.u32 %v1036, %v1037
    %v1039 = vshll.u32 2475754826, %v1033
    %v1040 = vshrl.u32 2131351028, %v1034
    %v1041 = vor.u32 %v1039, %v1040
    %v1042 = vshll.u32 2131351028, %v1033
    %v1043 = vshrl.u32 2102212464, %v1034
    %v1044 = vor.u32 %v1042, %v1043
    %v1045 = vshll.u32 2102212464, %v1033
    %v1046 = vshrl.u32 920167782, %v1034
    %v1047 = vor.u32 %v1045, %v1046
    %v1048 = vshll.u32 920167782, %v1033
    %v1049 = vshrl.u32 1326507024, %v1034
    %v1050 = vor.u32 %v1048, %v1049
    %vm1051 = vcmp.lt.s32.totalorder %v1032, 1
    %vm1052 = vcmp.lt.s32.totalorder %v1032, 2
    %vm1053 = vcmp.lt.s32.totalorder %v1032, 3
    %vm1054 = vcmp.lt.s32.totalorder %v1032, 4
    %v1055 = vsel %vm1051, %v1035, %v1038
    %v1056 = vsel %vm1054, %v1044, 2102212464
    %v1057 = vsel %vm1053, %v1041, %v1056
    %v1058 = vsel %vm1052, %v1055, %v1057
    %v1059 = vsel %vm1051, %v1038, %v1041
    %v1060 = vsel %vm1054, %v1047, 920167782
    %v1061 = vsel %vm1053, %v1044, %v1060
    %v1062 = vsel %vm1052, %v1059, %v1061
    %v1063 = vsel %vm1051, %v1041, %v1044
    %v1064 = vsel %vm1054, %v1050, 1326507024
    %v1065 = vsel %vm1053, %v1047, %v1064
    %v1066 = vsel %vm1052, %v1063, %v1065
    %v1067 = vshll.u32 %v1027, 8
    %v1068 = vmul.u32.u64.compose %v1067, %v1066
    %v1069 = vextract.low.u32 %v1068
    %v1070 = vextract.high.u32 %v1068
    %v1071 = vmul.u32.u64.compose %v1067, %v1062
    %v1072 = vextract.low.u32 %v1071
    %v1073 = vextract.high.u32 %v1071
    %v1074 = vmul.u32 %v1067, %v1058
    %v1075 = vadd.s32 %v1070, %v1072
    %vm1076 = vc.u32 %v1070, %v1072
    %v1077 = vadd.s32 %v1073, 1
    %v1078 = vsel %vm1076, %v1077, %v1073
    %v1079 = vadd.s32 %v1074, %v1078
    %v1080 = vadd.s32 %v1079, 536870912
    %v1081 = vshrl.u32 %v1080, 30
    %v1082 = vshll.u32 %v1081, 30
    %v1083 = vsub.s32 %v1079, %v1082
    %vm1084 = vcmp.lt.s32.totalorder %v1083, 0
    %v1085 = vsub.s32 0, %v1083
    %v1086 = vsel %vm1084, %v1085, %v1083
    %v1087 = vclz %v1086
    %v1088 = vsub.s32 %v1087, 2
    %vm1089 = vcmp.gt.s32.totalorder 0, %v1088
    %v1090 = vsel %vm1089, 0, %v1088
    %v1091 = vsub.s32 32, %v1090
    %v1092 = vshll.u32 %v1083, %v1090
    %v1093 = vshrl.u32 %v1075, %v1091
    %v1094 = vor.u32 %v1092, %v1093
    %v1095 = vsub.s32 4294967266, %v1090
    %v1096 = vadd.s32 %v1095, 127
    %v1097 = vshll.u32 %v1096, 23
    %v1098 = vor.u32 4788187, %v1097
    %v1099 = vand.u32 2147483647, %v1098
    %v1101 = vcvt.s32.f32 %v1094
    %v1102 = vmul.f32 %v1101, %v1099
    %v1103 = vxor.u32 %v1102, 2147483648
    %v1104 = vsel %vm1021, %v1103, %v1102
    %v1105 = vsub.s32 4, %v1081
    %v1106 = vsel %vm1021, %v1105, %v1081
    %v1107 = vsel %vm1020, %v399, %v1104
    %v1108 = vsel %vm1020, 0, %v1106
    %v1109 = vcosq.f32.pop %v1107
    %v1110 = vsinq.f32.pop %v1107
    %vm1111 = vweird.f32 %v399
    %v1112 = vand.u32 %v1108, 3
    %vm1113 = vcmp.lt.s32.totalorder %v1112, 2
    %vm1114 = vcmp.eq.s32.totalorder %v1112, 0
    %v1115 = vxor.u32 %v1110, 2147483648
    %v1116 = vsel %vm1114, %v1109, %v1115
    %vm1117 = vcmp.eq.s32.totalorder %v1112, 2
    %v1118 = vxor.u32 %v1109, 2147483648
    %v1119 = vsel %vm1117, %v1118, %v1110
    %v1120 = vsel %vm1113, %v1116, %v1119
    %v1121 = vsel %vm1111, nan, %v1120
    %v1122 = vand.u32 2147483647, %v400
    %vm1123 = vcmp.le.f32.partialorder %v1122, 0.7853982
    %vm1124 = vcmp.lt.s32.totalorder %v400, 0
    %v1125 = vand.u32 %v400, 2139095040
    %v1126 = vshrl.u32 %v1125, 23
    %v1127 = vsub.s32 %v1126, 127
    %v1128 = vand.u32 2147483647, %v400
    %v1129 = vand.u32 %v1128, 8388607
    %v1130 = vor.u32 %v1129, 8388608
    %v1131 = vsub.s32 0, %v1130
    %v1132 = vadd.s32 %v1127, 1
    %vm1133 = vcmp.gt.s32.totalorder %v1132, 0
    %v1134 = vsel %vm1133, %v1132, 0
    %v1135 = vshrl.u32 %v1134, 5
    %v1136 = vand.u32 %v1134, 31
    %v1137 = vsub.s32 32, %v1136
    %v1138 = vshrl.u32 683565275, %v1137
    %v1139 = vshll.u32 683565275, %v1136
    %v1140 = vshrl.u32 2475754826, %v1137
    %v1141 = vor.u32 %v1139, %v1140
    %v1142 = vshll.u32 2475754826, %v1136
    %v1143 = vshrl.u32 2131351028, %v1137
    %v1144 = vor.u32 %v1142, %v1143
    %v1145 = vshll.u32 2131351028, %v1136
    %v1146 = vshrl.u32 2102212464, %v1137
    %v1147 = vor.u32 %v1145, %v1146
    %v1148 = vshll.u32 2102212464, %v1136
    %v1149 = vshrl.u32 920167782, %v1137
    %v1150 = vor.u32 %v1148, %v1149
    %v1151 = vshll.u32 920167782, %v1136
    %v1152 = vshrl.u32 1326507024, %v1137
    %v1153 = vor.u32 %v1151, %v1152
    %vm1154 = vcmp.lt.s32.totalorder %v1135, 1
    %vm1155 = vcmp.lt.s32.totalorder %v1135, 2
    %vm1156 = vcmp.lt.s32.totalorder %v1135, 3
    %vm1157 = vcmp.lt.s32.totalorder %v1135, 4
    %v1158 = vsel %vm1154, %v1138, %v1141
    %v1159 = vsel %vm1157, %v1147, 2102212464
    %v1160 = vsel %vm1156, %v1144, %v1159
    %v1161 = vsel %vm1155, %v1158, %v1160
    %v1162 = vsel %vm1154, %v1141, %v1144
    %v1163 = vsel %vm1157, %v1150, 920167782
    %v1164 = vsel %vm1156, %v1147, %v1163
    %v1165 = vsel %vm1155, %v1162, %v1164
    %v1166 = vsel %vm1154, %v1144, %v1147
    %v1167 = vsel %vm1157, %v1153, 1326507024
    %v1168 = vsel %vm1156, %v1150, %v1167
    %v1169 = vsel %vm1155, %v1166, %v1168
    %v1170 = vshll.u32 %v1130, 8
    %v1171 = vmul.u32.u64.compose %v1170, %v1169
    %v1172 = vextract.low.u32 %v1171
    %v1173 = vextract.high.u32 %v1171
    %v1174 = vmul.u32.u64.compose %v1170, %v1165
    %v1175 = vextract.low.u32 %v1174
    %v1176 = vextract.high.u32 %v1174
    %v1177 = vmul.u32 %v1170, %v1161
    %v1178 = vadd.s32 %v1173, %v1175
    %vm1179 = vc.u32 %v1173, %v1175
    %v1180 = vadd.s32 %v1176, 1
    %v1181 = vsel %vm1179, %v1180, %v1176
    %v1182 = vadd.s32 %v1177, %v1181
    %v1183 = vadd.s32 %v1182, 536870912
    %v1184 = vshrl.u32 %v1183, 30
    %v1185 = vshll.u32 %v1184, 30
    %v1186 = vsub.s32 %v1182, %v1185
    %vm1187 = vcmp.lt.s32.totalorder %v1186, 0
    %v1188 = vsub.s32 0, %v1186
    %v1189 = vsel %vm1187, %v1188, %v1186
    %v1190 = vclz %v1189
    %v1191 = vsub.s32 %v1190, 2
    %vm1192 = vcmp.gt.s32.totalorder 0, %v1191
    %v1193 = vsel %vm1192, 0, %v1191
    %v1194 = vsub.s32 32, %v1193
    %v1195 = vshll.u32 %v1186, %v1193
    %v1196 = vshrl.u32 %v1178, %v1194
    %v1197 = vor.u32 %v1195, %v1196
    %v1198 = vsub.s32 4294967266, %v1193
    %v1199 = vadd.s32 %v1198, 127
    %v1200 = vshll.u32 %v1199, 23
    %v1201 = vor.u32 4788187, %v1200
    %v1202 = vand.u32 2147483647, %v1201
    %v1204 = vcvt.s32.f32 %v1197
    %v1205 = vmul.f32 %v1204, %v1202
    %v1206 = vxor.u32 %v1205, 2147483648
    %v1207 = vsel %vm1124, %v1206, %v1205
    %v1208 = vsub.s32 4, %v1184
    %v1209 = vsel %vm1124, %v1208, %v1184
    %v1210 = vsel %vm1123, %v400, %v1207
    %v1211 = vsel %vm1123, 0, %v1209
    %v1212 = vcosq.f32.pop %v1210
    %v1213 = vsinq.f32.pop %v1210
    %vm1214 = vweird.f32 %v400
    %v1215 = vand.u32 %v1211, 3
    %vm1216 = vcmp.lt.s32.totalorder %v1215, 2
    %vm1217 = vcmp.eq.s32.totalorder %v1215, 0
    %v1218 = vxor.u32 %v1213, 2147483648
    %v1219 = vsel %vm1217, %v1212, %v1218
    %vm1220 = vcmp.eq.s32.totalorder %v1215, 2
    %v1221 = vxor.u32 %v1212, 2147483648
    %v1222 = vsel %vm1220, %v1221, %v1213
    %v1223 = vsel %vm1216, %v1219, %v1222
    %v1224 = vsel %vm1214, nan, %v1223
    %v1225 = vmul.f32 %v343, %v503
    %v1226 = vmul.f32 %v350, %v606
    %v1227 = vmul.f32 %v357, %v709
    %v1228 = vmul.f32 %v364, %v812
    %v1229 = vmul.f32 %v371, %v915
    %v1230 = vmul.f32 %v378, %v1018
    %v1231 = vmul.f32 %v385, %v1121
    %v1232 = vmul.f32 %v392, %v1224
    %v1233 = vld [vmem:[#allocation4] sm:$0xff]
    %v1234 = vld [vmem:[#allocation4 + $0x8] sm:$0xff]
    %v1235 = vld [vmem:[#allocation4 + $0x10] sm:$0xff]
    %v1236 = vld [vmem:[#allocation4 + $0x18] sm:$0xff]
    %v1237 = vld [vmem:[#allocation4 + $0x20] sm:$0xff]
    %v1238 = vld [vmem:[#allocation4 + $0x28] sm:$0xff]
    %v1239 = vld [vmem:[#allocation4 + $0x30] sm:$0xff]
    %v1240 = vld [vmem:[#allocation4 + $0x38] sm:$0xff]
    %v1241 = vmul.f32 %v1225, 0.15
    %v1242 = vmul.f32 %v1226, 0.15
    %v1243 = vmul.f32 %v1227, 0.15
    %v1244 = vmul.f32 %v1228, 0.15
    %v1245 = vmul.f32 %v1229, 0.15
    %v1246 = vmul.f32 %v1230, 0.15
    %v1247 = vmul.f32 %v1231, 0.15
    %v1248 = vmul.f32 %v1232, 0.15
    %v1249 = vadd.f32 %v1233, %v1241
    %v1250 = vadd.f32 %v1234, %v1242
    %v1251 = vadd.f32 %v1235, %v1243
    %v1252 = vadd.f32 %v1236, %v1244
    %v1253 = vadd.f32 %v1237, %v1245
    %v1254 = vadd.f32 %v1238, %v1246
    %v1255 = vadd.f32 %v1239, %v1247
    %v1256 = vadd.f32 %v1240, %v1248
    %1257 = vst [vmem:[#allocation7] sm:$0xff] %v1249
    %1258 = vst [vmem:[#allocation7 + $0x8] sm:$0xff] %v1250
    %1259 = vst [vmem:[#allocation7 + $0x10] sm:$0xff] %v1251
    %1260 = vst [vmem:[#allocation7 + $0x18] sm:$0xff] %v1252
    %1261 = vst [vmem:[#allocation7 + $0x20] sm:$0xff] %v1253
    %1262 = vst [vmem:[#allocation7 + $0x28] sm:$0xff] %v1254
    %1263 = vst [vmem:[#allocation7 + $0x30] sm:$0xff] %v1255
    %1264 = vst [vmem:[#allocation7 + $0x38] sm:$0xff] %v1256
    // Predicated region
    $region10: #{tpu_custom_call.1} parent=1 // pred_check
      _
    $region11: #{tpu_custom_call.1} parent=1 // pred_check_branch
      %1266 = sbr.rel (0) target = $region13
    $region12: #{tpu_custom_call.1} parent=1 // pred_region
      %s1268 = ssub.s32 1024, 1024
      %1269 = vsyncadd [#allocation6], %s1268
      %s1271 = sshll.u32 [#allocation7], 4
      %s1272 = int_to_ptr.vmem [resolvable:$true] %s1271
      %1274 = dma.vmem_to_hbm [thread:$0]  %s1272, 1024, %s2, [#allocation6]
    $region13: #{tpu_custom_call.1} parent=1 // pred_fallthru
      _
    // Predicated region
    $region14: #{tpu_custom_call.1} parent=1 // pred_check
      _
    $region15: #{tpu_custom_call.1} parent=1 // pred_check_branch
      %1276 = sbr.rel (0) target = $region17
    $region16: #{tpu_custom_call.1} parent=1 // pred_region
      %1277 = dma.done [#allocation6], 1024
    $region17: #{tpu_custom_call.1} parent=1 // pred_fallthru
      _
    %1278 = vsyncpa [#allocation5], 1
    %1279 = vsyncpa [#allocation6], 1

</llo_original>
